<compile_context>
chip_gen: v6e
topology: v6e:2x2x1
jax: 0.10.0
libtpu: 0.0.40
codegen_flags: <defaults>
</compile_context>

<pallas_src>
import functools

import jax
import jax.numpy as jnp
from jax.experimental import pallas as pl
from jax.experimental.pallas import tpu as pltpu


def _round_up(x, m):
    return ((x + m - 1) // m) * m


def rnn_seq_kernel(h0_ref, x_ref, wx_ref, wh_ref, b_ref, y_ref, h_scr):
    """One grid step == one RNN timestep.

    h0_ref : (B, N_pad)      initial hidden in cols [0, H), zeros elsewhere
    x_ref  : (B, I)          input for this timestep (time dim squeezed)
    wx_ref : (I, N_pad)      [W_xh | W_xo | 0]
    wh_ref : (N_pad, N_pad)  rows [0,H): [W_hh | W_ho | 0]; rows >= H: zeros
    b_ref  : (1, N_pad)      [b_h | b_o | 0]
    y_ref  : (B, N_pad)      per-step fused slab: [new_hidden | output | 0]
    h_scr  : (B, N_pad)      VMEM-resident recurrent state (persists over grid)
    """
    t = pl.program_id(0)

    @pl.when(t == 0)
    def _():
        h_scr[...] = h0_ref[...]

    fused = (
        jnp.dot(x_ref[...], wx_ref[...], preferred_element_type=jnp.float32)
        + jnp.dot(h_scr[...], wh_ref[...], preferred_element_type=jnp.float32)
        + b_ref[...]
    )
    # Carry the full padded slab: padded / output columns are neutralized by
    # the zero rows of wh_ref, so no column slicing is needed in-kernel.
    h_scr[...] = fused
    y_ref[...] = fused.astype(y_ref.dtype)


def prepare_params(w_h, b_h, w_o, b_o, input_size):
    """One-time conversion of PyTorch-layout weights to the fused kernel layout.

    w_h: (H, I+H)  i2h.weight     b_h: (H,)
    w_o: (O, I+H)  i2o.weight     b_o: (O,)
    """
    H = w_h.shape[0]
    O = w_o.shape[0]
    I = input_size
    assert w_h.shape[1] == I + H and w_o.shape[1] == I + H

    N_pad = _round_up(max(H + O, 128), 128)  # lane-dense output slab width

    # Split along the input dim: columns [0, I) act on x, [I, I+H) act on h.
    w_xh = w_h[:, :I].T  # (I, H)
    w_hh = w_h[:, I:].T  # (H, H)
    w_xo = w_o[:, :I].T  # (I, O)
    w_ho = w_o[:, I:].T  # (H, O)

    w_x = jnp.zeros((I, N_pad), jnp.float32)
    w_x = w_x.at[:, :H].set(w_xh).at[:, H:H + O].set(w_xo)

    w_hp = jnp.zeros((N_pad, N_pad), jnp.float32)
    w_hp = w_hp.at[:H, :H].set(w_hh).at[:H, H:H + O].set(w_ho)

    b = jnp.zeros((1, N_pad), jnp.float32)
    b = b.at[0, :H].set(b_h).at[0, H:H + O].set(b_o)

    return {"w_x": w_x, "w_h": w_hp, "b": b, "I": I, "H": H, "O": O,
            "N_pad": N_pad}


@functools.partial(jax.jit, static_argnames=())
def _run_sequence(xs, h0_pad, w_x, w_hp, b):
    T, B, I = xs.shape
    N_pad = w_x.shape[1]

    flops = int(2 * T * B * (I * N_pad + N_pad * N_pad))
    bytes_accessed = int(4 * (xs.size + T * B * N_pad + w_x.size
                              + w_hp.size + b.size + h0_pad.size))

    return pl.pallas_call(
        rnn_seq_kernel,
        out_shape=jax.ShapeDtypeStruct((T, B, N_pad), jnp.float32),
        grid=(T,),
        in_specs=[
            pl.BlockSpec((B, N_pad), lambda t: (0, 0)),         # h0 (resident)
            pl.BlockSpec((None, B, I), lambda t: (t, 0, 0)),    # x_t (streamed)
            pl.BlockSpec((I, N_pad), lambda t: (0, 0)),         # W_x (resident)
            pl.BlockSpec((N_pad, N_pad), lambda t: (0, 0)),     # W_h (resident)
            pl.BlockSpec((1, N_pad), lambda t: (0, 0)),         # b   (resident)
        ],
        out_specs=pl.BlockSpec((None, B, N_pad), lambda t: (t, 0, 0)),
        scratch_shapes=[pltpu.VMEM((B, N_pad), jnp.float32)],
        compiler_params=pltpu.CompilerParams(
            dimension_semantics=("arbitrary",),   # time recurrence: sequential
            vmem_limit_bytes=64 * 1024 * 1024,
        ),
        cost_estimate=pl.CostEstimate(flops=flops, transcendentals=0,
                                      bytes_accessed=bytes_accessed),
    )(h0_pad, xs, w_x, w_hp, b)


def rnn_sequence(xs, hidden0, params):
    """Run the RNN cell over a whole sequence in ONE pallas_call.

    xs: (T, B, I), hidden0: (B, H).
    Returns (outputs (T, B, O), final_hidden (B, H)).
    """
    T, B, _ = xs.shape
    H, O, N_pad = params["H"], params["O"], params["N_pad"]

    h0_pad = jnp.zeros((B, N_pad), jnp.float32).at[:, :H].set(hidden0)
    ys = _run_sequence(xs, h0_pad, params["w_x"], params["w_h"], params["b"])

    outputs = ys[:, :, H:H + O]      # (T, B, O)
    final_hidden = ys[-1, :, :H]     # (B, H)
    return outputs, final_hidden


def rnn_cell(x, hidden, params):
    """Exact equivalent of RNNModel.forward(x, hidden) -> (output, hidden)."""
    outs, new_hidden = rnn_sequence(x[None], hidden, params)
    return outs[0], new_hidden


def init_linear_params(key, out_features, in_features):
    """nn.Linear default init: uniform(-1/sqrt(fan_in), 1/sqrt(fan_in))."""
    k_w, k_b = jax.random.split(key)
    bound = 1.0 / jnp.sqrt(jnp.float32(in_features))
    w = jax.random.uniform(k_w, (out_features, in_features),
                           dtype=jnp.float32, minval=-bound, maxval=bound)
    b = jax.random.uniform(k_b, (out_features,),
                           dtype=jnp.float32, minval=-bound, maxval=bound)
    return w, b


if __name__ == "__main__":
    # Small shapes consistent with the module's forward.
    # NOTE: throughput scales ~linearly with batch up to ~128; B=2 is used only
    # to mirror the reference module's tiny example.
    batch = 2
    input_size = 16      # len(chars)
    hidden_size = 32
    output_size = 16     # len(chars)
    seq_len = 8

    key = jax.random.PRNGKey(0)
    k_x, k_i2h, k_i2o = jax.random.split(key, 3)

    # One-hot char inputs for the whole sequence.
    idx = jax.random.randint(k_x, (seq_len, batch), 0, input_size)
    xs = jax.nn.one_hot(idx, input_size, dtype=jnp.float32)        # (T, B, I)
    hidden0 = jnp.zeros((batch, hidden_size), dtype=jnp.float32)   # init_hidden()

    # PyTorch-layout parameters, converted once to the fused kernel layout.
    w_h, b_h = init_linear_params(k_i2h, hidden_size, input_size + hidden_size)
    w_o, b_o = init_linear_params(k_i2o, output_size, input_size + hidden_size)
    params = prepare_params(w_h, b_h, w_o, b_o, input_size)

    # Fused-sequence kernel: one pallas_call for all timesteps.
    outs, final_hidden = rnn_sequence(xs, hidden0, params)
    outs = jax.block_until_ready(outs)
    final_hidden = jax.block_until_ready(final_hidden)

    # Single-step API (exact RNNModel.forward semantics).
    out0, h1 = rnn_cell(xs[0], hidden0, params)
    out0 = jax.block_until_ready(out0)
    h1 = jax.block_until_ready(h1)

    # Pure-JAX reference: step the PyTorch cell math T times.
    ref_h = hidden0
    ref_outs = []
    for t in range(seq_len):
        combined = jnp.concatenate([xs[t], ref_h], axis=1)
        new_h = combined @ w_h.T + b_h
        out_t = combined @ w_o.T + b_o
        ref_outs.append(out_t)
        ref_h = new_h
    ref_outs = jnp.stack(ref_outs)

    assert outs.shape == (seq_len, batch, output_size)
    assert final_hidden.shape == (batch, hidden_size)
    assert jnp.allclose(outs, ref_outs, atol=1e-4), "sequence outputs mismatch"
    assert jnp.allclose(final_hidden, ref_h, atol=1e-4), "final hidden mismatch"
    assert jnp.allclose(out0, ref_outs[0], atol=1e-4), "single-step output mismatch"
    assert jnp.allclose(
        h1, jnp.concatenate([xs[0], hidden0], axis=1) @ w_h.T + b_h, atol=1e-4
    ), "single-step hidden mismatch"

    print("KERNEL_OK")
</pallas_src>

<mosaic_0001>
module attributes {stable_mosaic.version = 11 : i64} {
  func.func @rnn_seq_kernel(%arg0: i32, %arg1: memref<2x128xf32, #tpu.memory_space<vmem>>, %arg2: memref<1x2x16xf32, #tpu.memory_space<vmem>>, %arg3: memref<16x128xf32, #tpu.memory_space<vmem>>, %arg4: memref<128x128xf32, #tpu.memory_space<vmem>>, %arg5: memref<1x128xf32, #tpu.memory_space<vmem>>, %arg6: memref<1x2x128xf32, #tpu.memory_space<vmem>>, %arg7: memref<2x128xf32, #tpu.memory_space<vmem>>) attributes {dimension_semantics = [#tpu.dimension_semantics<arbitrary>], iteration_bounds = array<i64: 8>, scalar_prefetch = 0 : i64, scratch_operands = 1 : i64, tpu.core_type = #tpu.core_type<tc>, window_params = [{pipeline_mode = #tpu.pipeline_mode<synchronous>, transform_indices = @transform_0, window_bounds = array<i64: 2, 128>}, {transform_indices = @transform_1, window_bounds = array<i64: 1, 2, 16>}, {pipeline_mode = #tpu.pipeline_mode<synchronous>, transform_indices = @transform_2, window_bounds = array<i64: 16, 128>}, {pipeline_mode = #tpu.pipeline_mode<synchronous>, transform_indices = @transform_3, window_bounds = array<i64: 128, 128>}, {pipeline_mode = #tpu.pipeline_mode<synchronous>, transform_indices = @transform_4, window_bounds = array<i64: 1, 128>}, {transform_indices = @transform_5, window_bounds = array<i64: 1, 2, 128>}]} {
    %c0_i32 = arith.constant 0 : i32
    %0 = arith.cmpi eq, %arg0, %c0_i32 : i32
    %1 = arith.extui %0 : i1 to i32
    %c0_i32_0 = arith.constant 0 : i32
    %2 = arith.cmpi ne, %1, %c0_i32_0 : i32
    scf.if %2 {
      %c0_17 = arith.constant 0 : index
      %c0_18 = arith.constant 0 : index
      %18 = vector.load %arg1[%c0_17, %c0_18] : memref<2x128xf32, #tpu.memory_space<vmem>>, vector<2x128xf32>
      %c0_19 = arith.constant 0 : index
      %c0_20 = arith.constant 0 : index
      %19 = vector.load %arg7[%c0_19, %c0_20] : memref<2x128xf32, #tpu.memory_space<vmem>>, vector<2x128xf32>
      tpu.vector_store %arg7[%c0_19, %c0_20], %18 {strides = array<i32>} : memref<2x128xf32, #tpu.memory_space<vmem>>, vector<2x128xf32>,
    } else {
    }
    %c0 = arith.constant 0 : index
    %c0_1 = arith.constant 0 : index
    %c0_2 = arith.constant 0 : index
    %3 = vector.load %arg2[%c0, %c0_1, %c0_2] : memref<1x2x16xf32, #tpu.memory_space<vmem>>, vector<1x2x16xf32>
    %4 = vector.shape_cast %3 : vector<1x2x16xf32> to vector<2x16xf32>
    %c0_3 = arith.constant 0 : index
    %c0_4 = arith.constant 0 : index
    %5 = vector.load %arg3[%c0_3, %c0_4] : memref<16x128xf32, #tpu.memory_space<vmem>>, vector<16x128xf32>
    %cst = arith.constant dense<0.000000e+00> : vector<2x128xf32>
    %6 = tpu.matmul %4, %5, %cst {dimension_numbers = #tpu.dot_dimension_numbers<[1], [0], [0], [1], [0, 0, 1, 1], [], []>} : vector<2x16xf32>, vector<16x128xf32>, vector<2x128xf32> -> vector<2x128xf32>
    %c0_5 = arith.constant 0 : index
    %c0_6 = arith.constant 0 : index
    %7 = vector.load %arg7[%c0_5, %c0_6] : memref<2x128xf32, #tpu.memory_space<vmem>>, vector<2x128xf32>
    %c0_7 = arith.constant 0 : index
    %c0_8 = arith.constant 0 : index
    %8 = vector.load %arg4[%c0_7, %c0_8] : memref<128x128xf32, #tpu.memory_space<vmem>>, vector<128x128xf32>
    %cst_9 = arith.constant dense<0.000000e+00> : vector<2x128xf32>
    %9 = tpu.matmul %7, %8, %cst_9 {dimension_numbers = #tpu.dot_dimension_numbers<[1], [0], [0], [1], [0, 0, 1, 1], [], []>} : vector<2x128xf32>, vector<128x128xf32>, vector<2x128xf32> -> vector<2x128xf32>
    %10 = arith.addf %6, %9 : vector<2x128xf32>
    %c0_10 = arith.constant 0 : index
    %c0_11 = arith.constant 0 : index
    %11 = vector.load %arg5[%c0_10, %c0_11] : memref<1x128xf32, #tpu.memory_space<vmem>>, vector<1x128xf32>
    %12 = vector.broadcast %11 : vector<1x128xf32> to vector<2x128xf32>
    %13 = arith.addf %10, %12 : vector<2x128xf32>
    %c0_12 = arith.constant 0 : index
    %c0_13 = arith.constant 0 : index
    %14 = vector.load %arg7[%c0_12, %c0_13] : memref<2x128xf32, #tpu.memory_space<vmem>>, vector<2x128xf32>
    tpu.vector_store %arg7[%c0_12, %c0_13], %13 {strides = array<i32>} : memref<2x128xf32, #tpu.memory_space<vmem>>, vector<2x128xf32>,
    %c0_14 = arith.constant 0 : index
    %c0_15 = arith.constant 0 : index
    %c0_16 = arith.constant 0 : index
    %15 = vector.load %arg6[%c0_14, %c0_15, %c0_16] : memref<1x2x128xf32, #tpu.memory_space<vmem>>, vector<1x2x128xf32>
    %16 = vector.shape_cast %15 : vector<1x2x128xf32> to vector<2x128xf32>
    %17 = vector.shape_cast %13 : vector<2x128xf32> to vector<1x2x128xf32>
    tpu.vector_store %arg6[%c0_14, %c0_15, %c0_16], %17 {strides = array<i32>} : memref<1x2x128xf32, #tpu.memory_space<vmem>>, vector<1x2x128xf32>,
    return
  }
  func.func @transform_0(%arg0: i32) -> (i32, i32) {
    %c0_i32 = arith.constant 0 : i32
    %c0_i32_0 = arith.constant 0 : i32
    %c0_i32_1 = arith.constant 0 : i32
    return %c0_i32, %c0_i32_0 : i32, i32
  }
  func.func @transform_1(%arg0: i32) -> (i32, i32, i32) {
    %c0_i32 = arith.constant 0 : i32
    %c0_i32_0 = arith.constant 0 : i32
    %c0_i32_1 = arith.constant 0 : i32
    return %arg0, %c0_i32, %c0_i32_0 : i32, i32, i32
  }
  func.func @transform_2(%arg0: i32) -> (i32, i32) {
    %c0_i32 = arith.constant 0 : i32
    %c0_i32_0 = arith.constant 0 : i32
    %c0_i32_1 = arith.constant 0 : i32
    return %c0_i32, %c0_i32_0 : i32, i32
  }
  func.func @transform_3(%arg0: i32) -> (i32, i32) {
    %c0_i32 = arith.constant 0 : i32
    %c0_i32_0 = arith.constant 0 : i32
    %c0_i32_1 = arith.constant 0 : i32
    return %c0_i32, %c0_i32_0 : i32, i32
  }
  func.func @transform_4(%arg0: i32) -> (i32, i32) {
    %c0_i32 = arith.constant 0 : i32
    %c0_i32_0 = arith.constant 0 : i32
    %c0_i32_1 = arith.constant 0 : i32
    return %c0_i32, %c0_i32_0 : i32, i32
  }
  func.func @transform_5(%arg0: i32) -> (i32, i32, i32) {
    %c0_i32 = arith.constant 0 : i32
    %c0_i32_0 = arith.constant 0 : i32
    %c0_i32_1 = arith.constant 0 : i32
    return %arg0, %c0_i32, %c0_i32_0 : i32, i32, i32
  }
}

</mosaic_0001>

<llo_original>
// kernel: _run_sequence.1
$region0: #{_run_sequence.1}
  #allocation0 [shape = 'u32[]', space=smem, size = 0x4, offset = 0x4, fixed_abs, tag = 'smem constant byte address 0x4 - core index']
  #allocation1 [shape = 'u32[144,128]{1,0:T(1,128)}', space=vmem, size = 0x12000, scoped, tag = 'internal scratch']
  #allocation2 [shape = 'f32[2,128]{1,0:T(2,128)}', space=vmem, size = 0x400, scoped, tag = 'scratch operand']
  %s0 = inlined_call_operand.hbm [shape: f32[2,128], index: 0, kind: input, shape index: {}]
  %s1 = inlined_call_operand.hbm [shape: f32[8,2,16], index: 1, kind: input, shape index: {}]
  %s2 = inlined_call_operand.hbm [shape: f32[16,128], index: 2, kind: input, shape index: {}]
  %s3 = inlined_call_operand.hbm [shape: f32[128,128], index: 3, kind: input, shape index: {}]
  %s4 = inlined_call_operand.vmem [shape: f32[1,128], index: 4, kind: input, shape index: {}]
  %s5 = inlined_call_operand.hbm [shape: f32[8,2,128], index: 5, kind: output, shape index: {}]
  %s6 = sld [smem:[#allocation0]]
  $region73: #{_run_sequence.1} parent=0
    _
  %s8 = ssub.s32 1, %s6
  %s9 = scalar_select 0, %s8, %s6
  $region1: #{_run_sequence.1} parent=0
    #allocation3 [shape = 'u8[1024]{0}', space=vmem, size = 0x400, scoped, tag = 'input window, operand 0, single buffered']
    #allocation4 [shape = 's32[2]{0}', space=sflag, size = 0x8, scoped, tag = 'scoped memory for _run_sequence.1']
    #allocation5 [shape = 's32[2]{0}', space=sflag, size = 0x8, scoped, tag = 'scoped memory for _run_sequence.1']
    #allocation6 [shape = 'u8[2048]{0}', space=vmem, size = 0x800, scoped, tag = 'input window, operand 1']
    #allocation7 [shape = 's32[2]{0}', space=sflag, size = 0x8, scoped, tag = 'scoped memory for _run_sequence.1']
    #allocation8 [shape = 'u8[8192]{0}', space=vmem, size = 0x2000, scoped, tag = 'input window, operand 2, single buffered']
    #allocation9 [shape = 'u8[65536]{0}', space=vmem, size = 0x10000, scoped, tag = 'input window, operand 3, single buffered']
    #allocation10 [shape = 's32[1]{0}', space=sflag, size = 0x4, scoped, tag = 'scoped memory for _run_sequence.1']
    #allocation11 [shape = 'u8[2048]{0}', space=vmem, size = 0x800, scoped, tag = 'output window, operand 0']
    %10 = vsyncpa [#allocation4], 0
    %11 = vsyncpa [#allocation7], 0
    %s12 = scalar_lea.sflag [#allocation7], 1
    %13 = vsyncpa %s12, 0
    %14 = vsyncpa [#allocation10], 0
    %15 = vsyncpa [#allocation5], 0
    %s16 = scalar_lea.sflag [#allocation5], 1
    %17 = vsyncpa %s16, 0
    loop: start=0, step=1, limit=10
    $region2: #{_run_sequence.1} parent=1 // loop_pre_header
      _
    $region3: #{_run_sequence.1} parent=1 // loop_header
      %s19 = sphi 0, %s23
      %p20 = scmp.ge.s32.totalorder %s19, 10
      %s27 = sphi 0, %s27
      %s29 = sphi 0, %s27
      %s30 = sphi 0, %s29
      %s44 = sphi 0, %s30
      %s50 = sphi 0, %s52
      %s53 = sphi 0, %s50
      %s54 = sphi 0, %s53
      %s70 = sphi 0, %s54
      %s74 = sphi 0, %s74
      %s76 = sphi 0, %s74
      %s77 = sphi 0, %s76
      %s91 = sphi 0, %s77
      %s95 = sphi 0, %s95
      %s97 = sphi 0, %s95
      %s98 = sphi 0, %s97
      %s112 = sphi 0, %s98
      %s116 = sphi 0, %s116
      %s118 = sphi 0, %s116
      %s119 = sphi 0, %s118
      %s133 = sphi 0, %s119
      %s139 = sphi 0, %s141
      %s142 = sphi 0, %s139
      %s143 = sphi 0, %s142
      %s159 = sphi 0, %s143
    $region4: #{_run_sequence.1} parent=1 // loop_header_branch
      %22 = sbr.rel (%p20) target = $region8
    $region5: #{_run_sequence.1} parent=1 // loop_body
      %s24 = ssub.s32 %s19, 1
      %s25 = ssub.s32 %s19, 2
      %s26 = sadd.s32 %s19, 1
      %s28 = sadd.s32 %s27, 1
      %p31 = scmp.eq.s32.totalorder %s19, 7
      %p32 = scmp.ne.s32.totalorder %s27, %s29
      %p33 = scmp.eq.s32.totalorder %s19, 0
      %p34 = por %p32, %p33
      %p35 = scmp.ne.s32.totalorder %s27, %s29
      %p36 = scmp.eq.s32.totalorder %s24, 7
      %p37 = por %p35, %p36
      %p38 = scmp.ne.s32.totalorder %s29, %s30
      %p39 = scmp.eq.s32.totalorder %s24, 0
      %p40 = por %p38, %p39
      %p41 = scmp.ne.s32.totalorder %s29, %s30
      %p42 = scmp.eq.s32.totalorder %s25, 7
      %p43 = por %p41, %p42
      %p45 = scmp.ne.s32.totalorder %s30, %s44
      %p46 = scmp.eq.s32.totalorder %s25, 0
      %p47 = por %p45, %p46
      %s48 = ssub.s32 %s19, %s26
      %p49 = scmp.eq.s32.totalorder %s48, 0
      %s51 = sadd.s32 %s50, 1
      %s52 = scalar_select %p49, %s50, %s51
      %p55 = pneg %p49
      %p56 = scmp.eq.s32.totalorder %s19, 7
      %p57 = por %p55, %p56
      %p58 = scmp.ne.s32.totalorder %s50, %s53
      %p59 = scmp.eq.s32.totalorder %s19, 0
      %p60 = por %p58, %p59
      %p61 = scmp.ne.s32.totalorder %s50, %s53
      %p62 = scmp.eq.s32.totalorder %s24, 7
      %p63 = por %p61, %p62
      %p64 = scmp.ne.s32.totalorder %s53, %s54
      %p65 = scmp.eq.s32.totalorder %s24, 0
      %p66 = por %p64, %p65
      %p67 = scmp.ne.s32.totalorder %s53, %s54
      %p68 = scmp.eq.s32.totalorder %s25, 7
      %p69 = por %p67, %p68
      %p71 = scmp.ne.s32.totalorder %s54, %s70
      %p72 = scmp.eq.s32.totalorder %s25, 0
      %p73 = por %p71, %p72
      %s75 = sadd.s32 %s74, 1
      %p78 = scmp.eq.s32.totalorder %s19, 7
      %p79 = scmp.ne.s32.totalorder %s74, %s76
      %p80 = scmp.eq.s32.totalorder %s19, 0
      %p81 = por %p79, %p80
      %p82 = scmp.ne.s32.totalorder %s74, %s76
      %p83 = scmp.eq.s32.totalorder %s24, 7
      %p84 = por %p82, %p83
      %p85 = scmp.ne.s32.totalorder %s76, %s77
      %p86 = scmp.eq.s32.totalorder %s24, 0
      %p87 = por %p85, %p86
      %p88 = scmp.ne.s32.totalorder %s76, %s77
      %p89 = scmp.eq.s32.totalorder %s25, 7
      %p90 = por %p88, %p89
      %p92 = scmp.ne.s32.totalorder %s77, %s91
      %p93 = scmp.eq.s32.totalorder %s25, 0
      %p94 = por %p92, %p93
      %s96 = sadd.s32 %s95, 1
      %p99 = scmp.eq.s32.totalorder %s19, 7
      %p100 = scmp.ne.s32.totalorder %s95, %s97
      %p101 = scmp.eq.s32.totalorder %s19, 0
      %p102 = por %p100, %p101
      %p103 = scmp.ne.s32.totalorder %s95, %s97
      %p104 = scmp.eq.s32.totalorder %s24, 7
      %p105 = por %p103, %p104
      %p106 = scmp.ne.s32.totalorder %s97, %s98
      %p107 = scmp.eq.s32.totalorder %s24, 0
      %p108 = por %p106, %p107
      %p109 = scmp.ne.s32.totalorder %s97, %s98
      %p110 = scmp.eq.s32.totalorder %s25, 7
      %p111 = por %p109, %p110
      %p113 = scmp.ne.s32.totalorder %s98, %s112
      %p114 = scmp.eq.s32.totalorder %s25, 0
      %p115 = por %p113, %p114
      %s117 = sadd.s32 %s116, 1
      %p120 = scmp.eq.s32.totalorder %s19, 7
      %p121 = scmp.ne.s32.totalorder %s116, %s118
      %p122 = scmp.eq.s32.totalorder %s19, 0
      %p123 = por %p121, %p122
      %p124 = scmp.ne.s32.totalorder %s116, %s118
      %p125 = scmp.eq.s32.totalorder %s24, 7
      %p126 = por %p124, %p125
      %p127 = scmp.ne.s32.totalorder %s118, %s119
      %p128 = scmp.eq.s32.totalorder %s24, 0
      %p129 = por %p127, %p128
      %p130 = scmp.ne.s32.totalorder %s118, %s119
      %p131 = scmp.eq.s32.totalorder %s25, 7
      %p132 = por %p130, %p131
      %p134 = scmp.ne.s32.totalorder %s119, %s133
      %p135 = scmp.eq.s32.totalorder %s25, 0
      %p136 = por %p134, %p135
      %s137 = ssub.s32 %s19, %s26
      %p138 = scmp.eq.s32.totalorder %s137, 0
      %s140 = sadd.s32 %s139, 1
      %s141 = scalar_select %p138, %s139, %s140
      %p144 = pneg %p138
      %p145 = scmp.eq.s32.totalorder %s19, 7
      %p146 = por %p144, %p145
      %p147 = scmp.ne.s32.totalorder %s139, %s142
      %p148 = scmp.eq.s32.totalorder %s19, 0
      %p149 = por %p147, %p148
      %p150 = scmp.ne.s32.totalorder %s139, %s142
      %p151 = scmp.eq.s32.totalorder %s24, 7
      %p152 = por %p150, %p151
      %p153 = scmp.ne.s32.totalorder %s142, %s143
      %p154 = scmp.eq.s32.totalorder %s24, 0
      %p155 = por %p153, %p154
      %p156 = scmp.ne.s32.totalorder %s142, %s143
      %p157 = scmp.eq.s32.totalorder %s25, 7
      %p158 = por %p156, %p157
      %p160 = scmp.ne.s32.totalorder %s143, %s159
      %p161 = scmp.eq.s32.totalorder %s25, 0
      %p162 = por %p160, %p161
      %p163 = scmp.le.s32.totalorder 1, %s19
      %p164 = scmp.lt.s32.totalorder %s19, 9
      %p165 = pnand %p163, %p164
      %p166 = pneg %p165
      // Predicated region
      $region9: #{_run_sequence.1} parent=5 // pred_check
        _
      $region10: #{_run_sequence.1} parent=5 // pred_check_branch
        %168 = sbr.rel (%p165) target = $region12
      $region11: #{_run_sequence.1} parent=5 // pred_region
        %s169 = ssub.s32 %s19, 1
        // Predicated region
        $region13: #{_run_sequence.1} parent=11 // pred_check
          %p170 = pneg %p40
        $region14: #{_run_sequence.1} parent=11 // pred_check_branch
          %172 = sbr.rel (%p170) target = $region16
        $region15: #{_run_sequence.1} parent=11 // pred_region
          %s174 = ssub.s32 32, 32
          %175 = vsyncadd [#allocation4], %s174
          %s177 = sshll.u32 [#allocation3], 4
          %s178 = int_to_ptr.vmem [resolvable:$true] %s177
          %180 = dma.hbm_to_vmem [thread:$0]  %s0, 32, %s178, [#allocation4]
        $region16: #{_run_sequence.1} parent=11 // pred_fallthru
          _
        // Predicated region
        $region17: #{_run_sequence.1} parent=11 // pred_check
          %p181 = pneg %p87
        $region18: #{_run_sequence.1} parent=11 // pred_check_branch
          %183 = sbr.rel (%p181) target = $region20
        $region19: #{_run_sequence.1} parent=11 // pred_region
          %s185 = ssub.s32 256, 256
          %186 = vsyncadd [#allocation7], %s185
          %s187 = sshll.u32 [#allocation8], 4
          %s188 = int_to_ptr.vmem [resolvable:$true] %s187
          %193 = dma.hbm_to_vmem [thread:$0]  %s2, 256, %s188, [#allocation7], 128, 128, 8
        $region20: #{_run_sequence.1} parent=11 // pred_fallthru
          _
        // Predicated region
        $region21: #{_run_sequence.1} parent=11 // pred_check
          %p194 = pneg %p108
        $region22: #{_run_sequence.1} parent=11 // pred_check_branch
          %196 = sbr.rel (%p194) target = $region24
        $region23: #{_run_sequence.1} parent=11 // pred_region
          %s198 = ssub.s32 2048, 2048
          %199 = vsyncadd [#allocation10], %s198
          %s200 = sshll.u32 [#allocation9], 4
          %s201 = int_to_ptr.vmem [resolvable:$true] %s200
          %206 = dma.hbm_to_vmem [thread:$0]  %s3, 2048, %s201, [#allocation10], 128, 128, 8
        $region24: #{_run_sequence.1} parent=11 // pred_fallthru
          _
        // Predicated region
        $region25: #{_run_sequence.1} parent=11 // pred_check
          %p207 = pneg %p129
        $region26: #{_run_sequence.1} parent=11 // pred_check_branch
          %209 = sbr.rel (%p207) target = $region28
        $region27: #{_run_sequence.1} parent=11 // pred_region
          _
        $region28: #{_run_sequence.1} parent=11 // pred_fallthru
          _
      $region12: #{_run_sequence.1} parent=5 // pred_fallthru
        _
      %p210 = scmp.lt.s32.totalorder %s19, 8
      // Predicated region
      $region29: #{_run_sequence.1} parent=5 // pred_check
        %p211 = pneg %p210
      $region30: #{_run_sequence.1} parent=5 // pred_check_branch
        %213 = sbr.rel (%p211) target = $region32
      $region31: #{_run_sequence.1} parent=5 // pred_region
        // Predicated region
        $region33: #{_run_sequence.1} parent=31 // pred_check
          %p214 = pneg %p60
        $region34: #{_run_sequence.1} parent=31 // pred_check_branch
          %216 = sbr.rel (%p214) target = $region36
        $region35: #{_run_sequence.1} parent=31 // pred_region
          %s217 = sand.u32 %s19, 1
          %s218 = scalar_lea.sflag [#allocation7], %s217
          %s219 = sand.u32 %s50, 1
          %s220 = smul.addr %s219, 2
          %s221 = scalar_lea.vmem [#allocation6], %s220
          %s223 = ssub.s32 32, 32
          %224 = vsyncadd %s218, %s223
          %s225 = smul.addr %s19, 32
          %s226 = scalar_lea.hbm %s1, %s225
          %s228 = sshll.u32 %s221, 4
          %s229 = int_to_ptr.vmem [resolvable:$true] %s228
          %231 = dma.hbm_to_vmem [thread:$0]  %s226, 32, %s229, %s218
        $region36: #{_run_sequence.1} parent=31 // pred_fallthru
          _
      $region32: #{_run_sequence.1} parent=5 // pred_fallthru
        _
      %p232 = scmp.le.s32.totalorder 1, %s19
      %p233 = scmp.lt.s32.totalorder %s19, 9
      %p234 = pnand %p232, %p233
      %p235 = pneg %p234
      // Predicated region
      $region37: #{_run_sequence.1} parent=5 // pred_check
        _
      $region38: #{_run_sequence.1} parent=5 // pred_check_branch
        %237 = sbr.rel (%p234) target = $region40
      $region39: #{_run_sequence.1} parent=5 // pred_region
        %s238 = ssub.s32 %s19, 1
        // Predicated region
        $region41: #{_run_sequence.1} parent=39 // pred_check
          %p239 = pneg %p40
        $region42: #{_run_sequence.1} parent=39 // pred_check_branch
          %241 = sbr.rel (%p239) target = $region44
        $region43: #{_run_sequence.1} parent=39 // pred_region
          %242 = dma.done [#allocation4], 32
        $region44: #{_run_sequence.1} parent=39 // pred_fallthru
          _
        %s243 = sand.u32 %s24, 1
        %s244 = scalar_lea.sflag [#allocation7], %s243
        %s245 = sand.u32 %s53, 1
        %s246 = smul.addr %s245, 2
        %s247 = scalar_lea.vmem [#allocation6], %s246
        // Predicated region
        $region45: #{_run_sequence.1} parent=39 // pred_check
          %p248 = pneg %p66
        $region46: #{_run_sequence.1} parent=39 // pred_check_branch
          %250 = sbr.rel (%p248) target = $region48
        $region47: #{_run_sequence.1} parent=39 // pred_region
          %251 = dma.done %s244, 32
        $region48: #{_run_sequence.1} parent=39 // pred_fallthru
          _
        // Predicated region
        $region49: #{_run_sequence.1} parent=39 // pred_check
          %p252 = pneg %p87
        $region50: #{_run_sequence.1} parent=39 // pred_check_branch
          %254 = sbr.rel (%p252) target = $region52
        $region51: #{_run_sequence.1} parent=39 // pred_region
          %255 = dma.done [#allocation7], 256
        $region52: #{_run_sequence.1} parent=39 // pred_fallthru
          _
        // Predicated region
        $region53: #{_run_sequence.1} parent=39 // pred_check
          %p256 = pneg %p108
        $region54: #{_run_sequence.1} parent=39 // pred_check_branch
          %258 = sbr.rel (%p256) target = $region56
        $region55: #{_run_sequence.1} parent=39 // pred_region
          %259 = dma.done [#allocation10], 2048
        $region56: #{_run_sequence.1} parent=39 // pred_fallthru
          _
        %p260 = pneg %p40
        %p261 = pneg %p37
        %s262 = sand.u32 %s24, 1
        %s263 = scalar_lea.sflag [#allocation7], %s262
        %s264 = sand.u32 %s53, 1
        %s265 = smul.addr %s264, 2
        %s266 = scalar_lea.vmem [#allocation6], %s265
        %p267 = pneg %p66
        %p268 = pneg %p63
        %p269 = pneg %p87
        %p270 = pneg %p84
        %p271 = pneg %p108
        %p272 = pneg %p105
        %p273 = pneg %p129
        %p274 = pneg %p126
        %p275 = pneg %p155
        %p276 = pneg %p152
        %s277 = sand.u32 %s142, 1
        %s278 = scalar_lea.sflag [#allocation5], %s277
        %s279 = sand.u32 %s142, 1
        %s280 = smul.addr %s279, 2
        %s281 = scalar_lea.vmem [#allocation11], %s280
        %p282 = scmp.eq.s32.totalorder %s24, 0
        // Predicated region
        $region57: #{_run_sequence.1} parent=39 // pred_check
          %p283 = pneg %p282
        $region58: #{_run_sequence.1} parent=39 // pred_check_branch
          %285 = sbr.rel (%p283) target = $region60
        $region59: #{_run_sequence.1} parent=39 // pred_region
          %v286 = vld [vmem:[#allocation3] sm:$0x3]
          %287 = vst [vmem:[#allocation2] sm:$0x3] %v286
        $region60: #{_run_sequence.1} parent=39 // pred_fallthru
          _
        %v288 = vld [vmem:[%s247] sm:$0x3]
        %v289 = vld [vmem:[#allocation8] sm:$0xff]
        %v290 = vld [vmem:[#allocation8 + $0x8] sm:$0xff]
        %v291 = vld [vmem:[#allocation2] sm:$0x3]
        %v292 = vld [vmem:[#allocation9] sm:$0xff]
        %v293 = vld [vmem:[#allocation9 + $0x8] sm:$0xff]
        %v294 = vld [vmem:[#allocation9 + $0x10] sm:$0xff]
        %v295 = vld [vmem:[#allocation9 + $0x18] sm:$0xff]
        %v296 = vld [vmem:[#allocation9 + $0x20] sm:$0xff]
        %v297 = vld [vmem:[#allocation9 + $0x28] sm:$0xff]
        %v298 = vld [vmem:[#allocation9 + $0x30] sm:$0xff]
        %v299 = vld [vmem:[#allocation9 + $0x38] sm:$0xff]
        %v300 = vld [vmem:[#allocation9 + $0x40] sm:$0xff]
        %v301 = vld [vmem:[#allocation9 + $0x48] sm:$0xff]
        %v302 = vld [vmem:[#allocation9 + $0x50] sm:$0xff]
        %v303 = vld [vmem:[#allocation9 + $0x58] sm:$0xff]
        %v304 = vld [vmem:[#allocation9 + $0x60] sm:$0xff]
        %v305 = vld [vmem:[#allocation9 + $0x68] sm:$0xff]
        %v306 = vld [vmem:[#allocation9 + $0x70] sm:$0xff]
        %v307 = vld [vmem:[#allocation9 + $0x78] sm:$0xff]
        %308 = vmatprep.subr.mxu0 0.0
        %309 = vmatpush1.msra.mxu0 %v307
        %310 = vmatprep.subr.mxu0 0.0
        %311 = vmatpush1.msra.mxu0 %v306
        %312 = vmatprep.subr.mxu0 0.0
        %313 = vmatpush1.msra.mxu0 %v305
        %314 = vmatprep.subr.mxu0 0.0
        %315 = vmatpush1.msra.mxu0 %v304
        %316 = vmatprep.subr.mxu0 0.0
        %317 = vmatpush1.msra.mxu0 %v303
        %318 = vmatprep.subr.mxu0 0.0
        %319 = vmatpush1.msra.mxu0 %v302
        %320 = vmatprep.subr.mxu0 0.0
        %321 = vmatpush1.msra.mxu0 %v301
        %322 = vmatprep.subr.mxu0 0.0
        %323 = vmatpush1.msra.mxu0 %v300
        %324 = vmatprep.subr.mxu0 0.0
        %325 = vmatpush1.msra.mxu0 %v299
        %326 = vmatprep.subr.mxu0 0.0
        %327 = vmatpush1.msra.mxu0 %v298
        %328 = vmatprep.subr.mxu0 0.0
        %329 = vmatpush1.msra.mxu0 %v297
        %330 = vmatprep.subr.mxu0 0.0
        %331 = vmatpush1.msra.mxu0 %v296
        %332 = vmatprep.subr.mxu0 0.0
        %333 = vmatpush1.msra.mxu0 %v295
        %334 = vmatprep.subr.mxu0 0.0
        %335 = vmatpush1.msra.mxu0 %v294
        %336 = vmatprep.subr.mxu0 0.0
        %337 = vmatpush1.msra.mxu0 %v293
        %338 = vmatprep.subr.mxu0 0.0
        %339 = vmatpush1.msra.mxu0 %v292
        %340 = vmatprep.subr.mxu0 0.0
        %341 = vmatpush2.msra.mxu0 0.0
        %342 = vmatprep.subr.mxu0 0.0
        %343 = vmatpush2.msra.mxu0 0.0
        %344 = vmatprep.subr.mxu0 0.0
        %345 = vmatpush2.msra.mxu0 0.0
        %346 = vmatprep.subr.mxu0 0.0
        %347 = vmatpush2.msra.mxu0 0.0
        %348 = vmatprep.subr.mxu0 0.0
        %349 = vmatpush2.msra.mxu0 0.0
        %350 = vmatprep.subr.mxu0 0.0
        %351 = vmatpush2.msra.mxu0 0.0
        %352 = vmatprep.subr.mxu0 0.0
        %353 = vmatpush2.msra.mxu0 0.0
        %354 = vmatprep.subr.mxu0 0.0
        %355 = vmatpush2.msra.mxu0 0.0
        %356 = vmatprep.subr.mxu0 0.0
        %357 = vmatpush2.msra.mxu0 0.0
        %358 = vmatprep.subr.mxu0 0.0
        %359 = vmatpush2.msra.mxu0 0.0
        %360 = vmatprep.subr.mxu0 0.0
        %361 = vmatpush2.msra.mxu0 0.0
        %362 = vmatprep.subr.mxu0 0.0
        %363 = vmatpush2.msra.mxu0 0.0
        %364 = vmatprep.subr.mxu0 0.0
        %365 = vmatpush2.msra.mxu0 0.0
        %366 = vmatprep.subr.mxu0 0.0
        %367 = vmatpush2.msra.mxu0 0.0
        %368 = vmatprep.subr.mxu0 0.0
        %369 = vmatpush2.msra.mxu0 0.0
        %370 = vmatprep.subr.mxu0 0.0
        %371 = vmatpush2.msra.mxu0 0.0
        %372 = vmatprep.mubr.f32.mxu0 0.0
        %373 = vmatmul.mubr.f32.gmra.mxu0 %v291
        %v374 = vpop.f32.mrf.mxu0
        %v375 = vadd.f32 0.0, %v374
        %v376 = vpop.f32.mrf.mxu0
        %377 = vdwg.mxu0
        %vm378 = vcmask 130048
        %v380 = vsel %vm378, %v288, 0
        %382 = vmatprep.subr.mxu0 0.0
        %383 = vmatpush1.msra.mxu0 0.0
        %384 = vmatprep.subr.mxu0 0.0
        %385 = vmatpush1.msra.mxu0 0.0
        %386 = vmatprep.subr.mxu0 0.0
        %387 = vmatpush1.msra.mxu0 0.0
        %388 = vmatprep.subr.mxu0 0.0
        %389 = vmatpush1.msra.mxu0 0.0
        %390 = vmatprep.subr.mxu0 0.0
        %391 = vmatpush1.msra.mxu0 0.0
        %392 = vmatprep.subr.mxu0 0.0
        %393 = vmatpush1.msra.mxu0 0.0
        %394 = vmatprep.subr.mxu0 0.0
        %395 = vmatpush1.msra.mxu0 0.0
        %396 = vmatprep.subr.mxu0 0.0
        %397 = vmatpush1.msra.mxu0 0.0
        %398 = vmatprep.subr.mxu0 0.0
        %399 = vmatpush1.msra.mxu0 0.0
        %400 = vmatprep.subr.mxu0 0.0
        %401 = vmatpush1.msra.mxu0 0.0
        %402 = vmatprep.subr.mxu0 0.0
        %403 = vmatpush1.msra.mxu0 0.0
        %404 = vmatprep.subr.mxu0 0.0
        %405 = vmatpush1.msra.mxu0 0.0
        %406 = vmatprep.subr.mxu0 0.0
        %407 = vmatpush1.msra.mxu0 0.0
        %408 = vmatprep.subr.mxu0 0.0
        %409 = vmatpush1.msra.mxu0 0.0
        %410 = vmatprep.subr.mxu0 0.0
        %411 = vmatpush1.msra.mxu0 %v290
        %412 = vmatprep.subr.mxu0 0.0
        %413 = vmatpush1.msra.mxu0 %v289
        %414 = vmatprep.subr.mxu0 0.0
        %415 = vmatpush2.msra.mxu0 0.0
        %416 = vmatprep.subr.mxu0 0.0
        %417 = vmatpush2.msra.mxu0 0.0
        %418 = vmatprep.subr.mxu0 0.0
        %419 = vmatpush2.msra.mxu0 0.0
        %420 = vmatprep.subr.mxu0 0.0
        %421 = vmatpush2.msra.mxu0 0.0
        %422 = vmatprep.subr.mxu0 0.0
        %423 = vmatpush2.msra.mxu0 0.0
        %424 = vmatprep.subr.mxu0 0.0
        %425 = vmatpush2.msra.mxu0 0.0
        %426 = vmatprep.subr.mxu0 0.0
        %427 = vmatpush2.msra.mxu0 0.0
        %428 = vmatprep.subr.mxu0 0.0
        %429 = vmatpush2.msra.mxu0 0.0
        %430 = vmatprep.subr.mxu0 0.0
        %431 = vmatpush2.msra.mxu0 0.0
        %432 = vmatprep.subr.mxu0 0.0
        %433 = vmatpush2.msra.mxu0 0.0
        %434 = vmatprep.subr.mxu0 0.0
        %435 = vmatpush2.msra.mxu0 0.0
        %436 = vmatprep.subr.mxu0 0.0
        %437 = vmatpush2.msra.mxu0 0.0
        %438 = vmatprep.subr.mxu0 0.0
        %439 = vmatpush2.msra.mxu0 0.0
        %440 = vmatprep.subr.mxu0 0.0
        %441 = vmatpush2.msra.mxu0 0.0
        %442 = vmatprep.subr.mxu0 0.0
        %443 = vmatpush2.msra.mxu0 0.0
        %444 = vmatprep.subr.mxu0 0.0
        %445 = vmatpush2.msra.mxu0 0.0
        %446 = vmatprep.mubr.f32.mxu0 0.0
        %447 = vmatmul.mubr.f32.gmra.mxu0 %v380
        %v448 = vpop.f32.mrf.mxu0
        %v449 = vadd.f32 %v375, %v448
        %v450 = vpop.f32.mrf.mxu0
        %451 = vdwg.mxu0
        %v452 = vld [vmem:[%s4] sm:$0x1]
        %v454 = vlaneseq
        %v455 = vshrl.u32 %v454, 7
        %v456 = vsub.s32 0, %v455
        %v457 = vrot.slane %v452, %v456
        %v459 = vadd.f32 %v449, %v457
        %460 = vst [vmem:[#allocation2] sm:$0x3] %v459
        %461 = vst [vmem:[%s281] sm:$0x3] %v459
        %s462 = sand.u32 %s142, 1
        %s463 = scalar_lea.sflag [#allocation5], %s462
        %s464 = sand.u32 %s142, 1
        %s465 = smul.addr %s464, 2
        %s466 = scalar_lea.vmem [#allocation11], %s465
        // Predicated region
        $region61: #{_run_sequence.1} parent=39 // pred_check
          %p467 = pneg %p152
        $region62: #{_run_sequence.1} parent=39 // pred_check_branch
          %469 = sbr.rel (%p467) target = $region64
        $region63: #{_run_sequence.1} parent=39 // pred_region
          %s471 = ssub.s32 32, 32
          %472 = vsyncadd %s463, %s471
          %s473 = smul.addr %s24, 32
          %s474 = scalar_lea.hbm %s5, %s473
          %s476 = sshll.u32 %s466, 4
          %s477 = int_to_ptr.vmem [resolvable:$true] %s476
          %479 = dma.vmem_to_hbm [thread:$0]  %s477, 32, %s474, %s463
        $region64: #{_run_sequence.1} parent=39 // pred_fallthru
          _
      $region40: #{_run_sequence.1} parent=5 // pred_fallthru
        _
      %p480 = scmp.le.s32.totalorder 2, %s19
      // Predicated region
      $region65: #{_run_sequence.1} parent=5 // pred_check
        %p481 = pneg %p480
      $region66: #{_run_sequence.1} parent=5 // pred_check_branch
        %483 = sbr.rel (%p481) target = $region68
      $region67: #{_run_sequence.1} parent=5 // pred_region
        %s484 = ssub.s32 %s19, 2
        // Predicated region
        $region69: #{_run_sequence.1} parent=67 // pred_check
          %p485 = pneg %p158
        $region70: #{_run_sequence.1} parent=67 // pred_check_branch
          %487 = sbr.rel (%p485) target = $region72
        $region71: #{_run_sequence.1} parent=67 // pred_region
          %s488 = sand.u32 %s143, 1
          %s489 = scalar_lea.sflag [#allocation5], %s488
          %s490 = sand.u32 %s143, 1
          %s491 = smul.addr %s490, 2
          %s492 = scalar_lea.vmem [#allocation11], %s491
          %493 = dma.done %s489, 32
        $region72: #{_run_sequence.1} parent=67 // pred_fallthru
          _
      $region68: #{_run_sequence.1} parent=5 // pred_fallthru
        _
    $region6: #{_run_sequence.1} parent=1 // loop_footer
      %s23 = sadd.s32 1, %s19
    $region7: #{_run_sequence.1} parent=1 // loop_footer_branch
      %18 = sbr.rel target = $region3
    $region8: #{_run_sequence.1} parent=1 // loop_exit
      _
    %494 = vsyncpa [#allocation4], 1
    %s495 = scalar_lea.sflag [#allocation4], 1
    %496 = vsyncpa %s495, 1
    %497 = vsyncpa [#allocation7], 1
    %s498 = scalar_lea.sflag [#allocation7], 1
    %499 = vsyncpa %s498, 1
    %500 = vsyncpa [#allocation10], 1
    %501 = vsyncpa [#allocation5], 1
    %s502 = scalar_lea.sflag [#allocation5], 1
    %503 = vsyncpa %s502, 1

</llo_original>
